<compile_context>
chip_gen: v5e
topology: v5e:2x2
jax: 0.10.0
libtpu: 0.0.40
codegen_flags: <defaults>
</compile_context>

<pallas_src>
from functools import partial

import jax
import jax.numpy as jnp
import numpy as np
from jax.experimental import pallas as pl
from jax.experimental.pallas import tpu as pltpu


def _round_up(x: int, m: int) -> int:
    return ((x + m - 1) // m) * m


def _hcnn_kernel(drive_ref, s0_ref, wA_ref, sst_ref, state_scr, *, chunk_t, unroll):
    # (Re)load the initial state at the first time-chunk of every batch block.
    @pl.when(pl.program_id(1) == 0)
    def _init():
        state_scr[...] = s0_ref[...]

    wA = wA_ref[...]                                   # resident (H, H), single copy

    def body(t, carry):
        s = state_scr[...]                             # (B_blk, H)  s_t
        sst_ref[t] = s                                 # dense, lane-aligned store
        state_scr[...] = (
            jnp.dot(jnp.tanh(s).astype(wA.dtype), wA,
                    preferred_element_type=jnp.float32)
            + drive_ref[t])                            # precomputed tanh(obs)@A + B u_{t+1}
        return carry

    jax.lax.fori_loop(0, chunk_t, body, 0, unroll=unroll)


def hcnn_forward(initial_state_vec, data_window, W_A, W_B, n_obs, n_ext_vars,
                 weight_dtype=jnp.float32):
    """initial_state_vec: (B, 1, n_hid); data_window: (B, T, 1, n_obs+n_ext_vars).

    Returns (Xions, out_clust, s_states) with PyTorch shapes
    (B, T, 1, n_obs), (B, T, 1, n_obs), (B, T, 1, n_hid).
    """
    B, T, _, D = data_window.shape
    n_hid = initial_state_vec.shape[-1]
    assert n_obs <= n_hid, "observables must fit in the hidden state"

    f32 = jnp.float32
    dw = jnp.squeeze(data_window, axis=2).astype(f32)              # (B, T, D)
    obs = jnp.transpose(dw[..., :n_obs], (1, 0, 2))                # (T, B, n_obs)
    ext = jnp.transpose(dw[..., D - n_ext_vars:], (1, 0, 2))       # (T, B, n_ext)

    W_Af = W_A.astype(f32)
    W_Bf = W_B.astype(f32)

    # --- hoisted XLA precompute (off the serial path) ---
    Bu = jnp.einsum('tbe,eh->tbh', ext, W_Bf, preferred_element_type=f32)  # (T,B,H)
    s0 = jnp.reshape(initial_state_vec, (B, n_hid)).astype(f32) + Bu[0]
    # drive[t] = tanh(obs_t) @ W_A[:n_obs, :] + B u_{t+1}; the last step's transition
    # is discarded so its Bu term is simply left out.
    drive = jnp.einsum('tbo,oh->tbh', jnp.tanh(obs), W_Af[:n_obs, :],
                       preferred_element_type=f32)
    drive = drive.at[:-1].add(Bu[1:])
    # W_A with the teacher-forced rows removed: tanh(s)[:n_obs] must contribute nothing.
    wA_masked = W_Af.at[:n_obs, :].set(0.0)

    # ---- padding / tiling ----
    H = _round_up(n_hid, 128)          # lane-dense hidden width
    B8 = _round_up(B, 8)

    # batch blocking: <= 512 rows per block, and >= 2 blocks whenever the batch allows
    # it so the "parallel" axis can shard across v7x's two TensorCores.
    n_b = max(1, -(-B8 // 512))
    if B8 >= 16:
        n_b = max(n_b, 2)

    # generation-aware VMEM budget
    try:
        vmem_cap = int(pltpu.get_tpu_info().vmem_capacity_bytes)
    except Exception:
        vmem_cap = 64 << 20                      # conservative (v7x-sized) fallback
    vmem_limit = min(vmem_cap * 3 // 4, vmem_cap - (8 << 20))

    wA_bytes = H * H * np.dtype(weight_dtype).itemsize
    assert wA_bytes < vmem_limit // 2, "W_A too large to keep resident in VMEM"

    while True:
        B_blk = _round_up(-(-B8 // n_b), 8)
        resident = wA_bytes + 3 * B_blk * H * 4          # W_A + s0 (x2 bufs) + scratch
        avail = vmem_limit - resident - (4 << 20)        # headroom for compiler internals
        bytes_per_t = 4 * B_blk * H * 4                  # drive (x2 bufs) + out (x2 bufs)
        chunk_t = int(max(1, min(T, 512, avail // bytes_per_t)))
        if chunk_t >= min(32, T) or B_blk <= 8:
            break
        n_b += 1                                         # shrink B_blk before chunk_t

    B_pad = n_b * B_blk
    T_pad = _round_up(T, chunk_t)
    n_t = T_pad // chunk_t

    drive_p = jnp.pad(drive, ((0, T_pad - T), (0, B_pad - B), (0, H - n_hid)))
    s0_p = jnp.pad(s0, ((0, B_pad - B), (0, H - n_hid)))
    wA_p = jnp.pad(wA_masked, ((0, H - n_hid), (0, H - n_hid))).astype(weight_dtype)

    grid_spec = pltpu.PrefetchScalarGridSpec(
        num_scalar_prefetch=0,
        grid=(n_b, n_t),
        in_specs=[
            pl.BlockSpec((chunk_t, B_blk, H), lambda b, tc: (tc, b, 0)),   # drive
            pl.BlockSpec((B_blk, H), lambda b, tc: (b, 0)),                # s0 (+ B u_0)
            pl.BlockSpec(memory_space=pltpu.MemorySpace.VMEM),             # W_A, resident
        ],
        out_specs=pl.BlockSpec((chunk_t, B_blk, H), lambda b, tc: (tc, b, 0)),
        scratch_shapes=[pltpu.VMEM((B_blk, H), jnp.float32)],
    )

    unroll = True if chunk_t <= 32 else 8   # full unroll short chunks, x8 otherwise

    sst = pl.pallas_call(
        partial(_hcnn_kernel, chunk_t=chunk_t, unroll=unroll),
        grid_spec=grid_spec,
        out_shape=jax.ShapeDtypeStruct((T_pad, B_pad, H), jnp.float32),
        compiler_params=pltpu.CompilerParams(
            dimension_semantics=("parallel", "arbitrary"),
            vmem_limit_bytes=int(vmem_limit)),
    )(drive_p, s0_p, wA_p)

    # Back to the PyTorch output layout (B, T, 1, feat); Xions / out_clust in XLA.
    # (The T->B transpose stays in XLA: an in-kernel B-major store would be a
    #  sublane-strided masked store on every step of the serial recurrence.)
    s_states = jnp.transpose(sst[:T, :B, :n_hid], (1, 0, 2))[:, :, None, :]  # (B,T,1,H)
    Xions = s_states[..., :n_obs]                                            # (B,T,1,n_obs)
    out_clust = Xions - data_window[:, :, :, :n_obs].astype(f32)             # (B,T,1,n_obs)
    return Xions, out_clust, s_states


def hcnn_reference(initial_state_vec, data_window, W_A, W_B, n_obs, n_ext_vars):
    """Pure-JAX reference (same math, no Pallas) for verification."""
    B, T, _, D = data_window.shape
    dw = data_window[:, :, 0, :]
    obs = dw[..., :n_obs]
    ext = dw[..., D - n_ext_vars:]
    s = initial_state_vec[:, 0, :] + ext[:, 0, :] @ W_B
    Xs, Os, Ss = [], [], []
    for t in range(T):
        Ss.append(s)
        e = s[:, :n_obs]
        d = e - obs[:, t]
        Xs.append(e)
        Os.append(d)
        if t < T - 1:
            r = jnp.concatenate([obs[:, t], s[:, n_obs:]], axis=-1)
            s = jnp.tanh(r) @ W_A + ext[:, t + 1] @ W_B
    Xions = jnp.stack(Xs, axis=1)[:, :, None, :]
    out_clust = jnp.stack(Os, axis=1)[:, :, None, :]
    s_states = jnp.stack(Ss, axis=1)[:, :, None, :]
    return Xions, out_clust, s_states


if __name__ == "__main__":
    # small shapes consistent with the module's forward (batched 4-D case)
    B, T = 2, 8
    n_obs, n_ext_vars, n_hid_vars = 8, 4, 32

    key = jax.random.PRNGKey(0)
    k_dw, k_s0, k_A, k_B = jax.random.split(key, 4)

    data_window = jax.random.normal(
        k_dw, (B, T, 1, n_obs + n_ext_vars), dtype=jnp.float32)
    # s0_nature='random_' -> uniform(-0.75, 0.75), shape (B, 1, n_hid)
    initial_state_vec = jax.random.uniform(
        k_s0, (B, 1, n_hid_vars), minval=-0.75, maxval=0.75, dtype=jnp.float32)
    # deterministic Linear-style weights (no bias); stored so that compute is x @ W
    W_A = jax.random.uniform(
        k_A, (n_hid_vars, n_hid_vars), minval=-1.0, maxval=1.0,
        dtype=jnp.float32) / jnp.sqrt(jnp.float32(n_hid_vars))
    W_B = jax.random.uniform(
        k_B, (n_ext_vars, n_hid_vars), minval=-1.0, maxval=1.0,
        dtype=jnp.float32) / jnp.sqrt(jnp.float32(n_ext_vars))

    Xions, out_clust, s_states = jax.block_until_ready(
        hcnn_forward(initial_state_vec, data_window, W_A, W_B, n_obs, n_ext_vars))

    Xr, Or, Sr = hcnn_reference(
        initial_state_vec, data_window, W_A, W_B, n_obs, n_ext_vars)

    assert Xions.shape == (B, T, 1, n_obs)
    assert out_clust.shape == (B, T, 1, n_obs)
    assert s_states.shape == (B, T, 1, n_hid_vars)
    np.testing.assert_allclose(np.asarray(Xions), np.asarray(Xr), atol=1e-4, rtol=1e-4)
    np.testing.assert_allclose(np.asarray(out_clust), np.asarray(Or), atol=1e-4, rtol=1e-4)
    np.testing.assert_allclose(np.asarray(s_states), np.asarray(Sr), atol=1e-4, rtol=1e-4)

    print("KERNEL_OK")
</pallas_src>

<mosaic_0001>
module attributes {stable_mosaic.version = 11 : i64} {
  func.func @_hcnn_kernel(%arg0: i32, %arg1: i32, %arg2: memref<8x8x128xf32, #tpu.memory_space<vmem>>, %arg3: memref<8x128xf32, #tpu.memory_space<vmem>>, %arg4: memref<128x128xf32, #tpu.memory_space<vmem>>, %arg5: memref<8x8x128xf32, #tpu.memory_space<vmem>>, %arg6: memref<8x128xf32, #tpu.memory_space<vmem>>) attributes {dimension_semantics = [#tpu.dimension_semantics<parallel>, #tpu.dimension_semantics<arbitrary>], iteration_bounds = array<i64: 1, 1>, scalar_prefetch = 0 : i64, scratch_operands = 1 : i64, tpu.core_type = #tpu.core_type<tc>, window_params = [{transform_indices = @transform_0, window_bounds = array<i64: 8, 8, 128>}, {transform_indices = @transform_1, window_bounds = array<i64: 8, 128>}, {pipeline_mode = #tpu.pipeline_mode<synchronous>, transform_indices = @transform_2, window_bounds = array<i64: 128, 128>}, {transform_indices = @transform_3, window_bounds = array<i64: 8, 8, 128>}]} {
    %c0_i32 = arith.constant 0 : i32
    %0 = arith.cmpi eq, %arg1, %c0_i32 : i32
    %1 = arith.extui %0 : i1 to i32
    %c0_i32_0 = arith.constant 0 : i32
    %2 = arith.cmpi ne, %1, %c0_i32_0 : i32
    scf.if %2 {
      %c0_74 = arith.constant 0 : index
      %c0_75 = arith.constant 0 : index
      %100 = vector.load %arg3[%c0_74, %c0_75] : memref<8x128xf32, #tpu.memory_space<vmem>>, vector<8x128xf32>
      %c0_76 = arith.constant 0 : index
      %c0_77 = arith.constant 0 : index
      %101 = vector.load %arg6[%c0_76, %c0_77] : memref<8x128xf32, #tpu.memory_space<vmem>>, vector<8x128xf32>
      tpu.vector_store %arg6[%c0_76, %c0_77], %100 {strides = array<i32>} : memref<8x128xf32, #tpu.memory_space<vmem>>, vector<8x128xf32>,
    } else {
    }
    %c0 = arith.constant 0 : index
    %c0_1 = arith.constant 0 : index
    %3 = vector.load %arg4[%c0, %c0_1] : memref<128x128xf32, #tpu.memory_space<vmem>>, vector<128x128xf32>
    %c0_i32_2 = arith.constant 0 : i32
    %c0_3 = arith.constant 0 : index
    %c0_4 = arith.constant 0 : index
    %4 = vector.load %arg6[%c0_3, %c0_4] : memref<8x128xf32, #tpu.memory_space<vmem>>, vector<8x128xf32>
    %5 = arith.index_cast %c0_i32_2 : i32 to index
    %c0_5 = arith.constant 0 : index
    %c0_6 = arith.constant 0 : index
    %6 = vector.load %arg5[%5, %c0_5, %c0_6] : memref<8x8x128xf32, #tpu.memory_space<vmem>>, vector<1x8x128xf32>
    %7 = vector.shape_cast %6 : vector<1x8x128xf32> to vector<8x128xf32>
    %8 = vector.shape_cast %4 : vector<8x128xf32> to vector<1x8x128xf32>
    tpu.vector_store %arg5[%5, %c0_5, %c0_6], %8 {strides = array<i32>} : memref<8x8x128xf32, #tpu.memory_space<vmem>>, vector<1x8x128xf32>,
    %9 = math.tanh %4 : vector<8x128xf32>
    %cst = arith.constant dense<0.000000e+00> : vector<8x128xf32>
    %10 = tpu.matmul %9, %3, %cst {dimension_numbers = #tpu.dot_dimension_numbers<[1], [0], [0], [1], [0, 0, 1, 1], [], []>} : vector<8x128xf32>, vector<128x128xf32>, vector<8x128xf32> -> vector<8x128xf32>
    %11 = arith.index_cast %c0_i32_2 : i32 to index
    %c0_7 = arith.constant 0 : index
    %c0_8 = arith.constant 0 : index
    %12 = vector.load %arg2[%11, %c0_7, %c0_8] : memref<8x8x128xf32, #tpu.memory_space<vmem>>, vector<1x8x128xf32>
    %13 = vector.shape_cast %12 : vector<1x8x128xf32> to vector<8x128xf32>
    %14 = arith.addf %10, %13 : vector<8x128xf32>
    %c0_9 = arith.constant 0 : index
    %c0_10 = arith.constant 0 : index
    %15 = vector.load %arg6[%c0_9, %c0_10] : memref<8x128xf32, #tpu.memory_space<vmem>>, vector<8x128xf32>
    tpu.vector_store %arg6[%c0_9, %c0_10], %14 {strides = array<i32>} : memref<8x128xf32, #tpu.memory_space<vmem>>, vector<8x128xf32>,
    %c1_i32 = arith.constant 1 : i32
    %c0_11 = arith.constant 0 : index
    %c0_12 = arith.constant 0 : index
    %16 = vector.load %arg6[%c0_11, %c0_12] : memref<8x128xf32, #tpu.memory_space<vmem>>, vector<8x128xf32>
    %17 = arith.index_cast %c1_i32 : i32 to index
    %c0_13 = arith.constant 0 : index
    %c0_14 = arith.constant 0 : index
    %18 = vector.load %arg5[%17, %c0_13, %c0_14] : memref<8x8x128xf32, #tpu.memory_space<vmem>>, vector<1x8x128xf32>
    %19 = vector.shape_cast %18 : vector<1x8x128xf32> to vector<8x128xf32>
    %20 = vector.shape_cast %16 : vector<8x128xf32> to vector<1x8x128xf32>
    tpu.vector_store %arg5[%17, %c0_13, %c0_14], %20 {strides = array<i32>} : memref<8x8x128xf32, #tpu.memory_space<vmem>>, vector<1x8x128xf32>,
    %21 = math.tanh %16 : vector<8x128xf32>
    %cst_15 = arith.constant dense<0.000000e+00> : vector<8x128xf32>
    %22 = tpu.matmul %21, %3, %cst_15 {dimension_numbers = #tpu.dot_dimension_numbers<[1], [0], [0], [1], [0, 0, 1, 1], [], []>} : vector<8x128xf32>, vector<128x128xf32>, vector<8x128xf32> -> vector<8x128xf32>
    %23 = arith.index_cast %c1_i32 : i32 to index
    %c0_16 = arith.constant 0 : index
    %c0_17 = arith.constant 0 : index
    %24 = vector.load %arg2[%23, %c0_16, %c0_17] : memref<8x8x128xf32, #tpu.memory_space<vmem>>, vector<1x8x128xf32>
    %25 = vector.shape_cast %24 : vector<1x8x128xf32> to vector<8x128xf32>
    %26 = arith.addf %22, %25 : vector<8x128xf32>
    %c0_18 = arith.constant 0 : index
    %c0_19 = arith.constant 0 : index
    %27 = vector.load %arg6[%c0_18, %c0_19] : memref<8x128xf32, #tpu.memory_space<vmem>>, vector<8x128xf32>
    tpu.vector_store %arg6[%c0_18, %c0_19], %26 {strides = array<i32>} : memref<8x128xf32, #tpu.memory_space<vmem>>, vector<8x128xf32>,
    %c2_i32 = arith.constant 2 : i32
    %c0_20 = arith.constant 0 : index
    %c0_21 = arith.constant 0 : index
    %28 = vector.load %arg6[%c0_20, %c0_21] : memref<8x128xf32, #tpu.memory_space<vmem>>, vector<8x128xf32>
    %29 = arith.index_cast %c2_i32 : i32 to index
    %c0_22 = arith.constant 0 : index
    %c0_23 = arith.constant 0 : index
    %30 = vector.load %arg5[%29, %c0_22, %c0_23] : memref<8x8x128xf32, #tpu.memory_space<vmem>>, vector<1x8x128xf32>
    %31 = vector.shape_cast %30 : vector<1x8x128xf32> to vector<8x128xf32>
    %32 = vector.shape_cast %28 : vector<8x128xf32> to vector<1x8x128xf32>
    tpu.vector_store %arg5[%29, %c0_22, %c0_23], %32 {strides = array<i32>} : memref<8x8x128xf32, #tpu.memory_space<vmem>>, vector<1x8x128xf32>,
    %33 = math.tanh %28 : vector<8x128xf32>
    %cst_24 = arith.constant dense<0.000000e+00> : vector<8x128xf32>
    %34 = tpu.matmul %33, %3, %cst_24 {dimension_numbers = #tpu.dot_dimension_numbers<[1], [0], [0], [1], [0, 0, 1, 1], [], []>} : vector<8x128xf32>, vector<128x128xf32>, vector<8x128xf32> -> vector<8x128xf32>
    %35 = arith.index_cast %c2_i32 : i32 to index
    %c0_25 = arith.constant 0 : index
    %c0_26 = arith.constant 0 : index
    %36 = vector.load %arg2[%35, %c0_25, %c0_26] : memref<8x8x128xf32, #tpu.memory_space<vmem>>, vector<1x8x128xf32>
    %37 = vector.shape_cast %36 : vector<1x8x128xf32> to vector<8x128xf32>
    %38 = arith.addf %34, %37 : vector<8x128xf32>
    %c0_27 = arith.constant 0 : index
    %c0_28 = arith.constant 0 : index
    %39 = vector.load %arg6[%c0_27, %c0_28] : memref<8x128xf32, #tpu.memory_space<vmem>>, vector<8x128xf32>
    tpu.vector_store %arg6[%c0_27, %c0_28], %38 {strides = array<i32>} : memref<8x128xf32, #tpu.memory_space<vmem>>, vector<8x128xf32>,
    %c3_i32 = arith.constant 3 : i32
    %c0_29 = arith.constant 0 : index
    %c0_30 = arith.constant 0 : index
    %40 = vector.load %arg6[%c0_29, %c0_30] : memref<8x128xf32, #tpu.memory_space<vmem>>, vector<8x128xf32>
    %41 = arith.index_cast %c3_i32 : i32 to index
    %c0_31 = arith.constant 0 : index
    %c0_32 = arith.constant 0 : index
    %42 = vector.load %arg5[%41, %c0_31, %c0_32] : memref<8x8x128xf32, #tpu.memory_space<vmem>>, vector<1x8x128xf32>
    %43 = vector.shape_cast %42 : vector<1x8x128xf32> to vector<8x128xf32>
    %44 = vector.shape_cast %40 : vector<8x128xf32> to vector<1x8x128xf32>
    tpu.vector_store %arg5[%41, %c0_31, %c0_32], %44 {strides = array<i32>} : memref<8x8x128xf32, #tpu.memory_space<vmem>>, vector<1x8x128xf32>,
    %45 = math.tanh %40 : vector<8x128xf32>
    %cst_33 = arith.constant dense<0.000000e+00> : vector<8x128xf32>
    %46 = tpu.matmul %45, %3, %cst_33 {dimension_numbers = #tpu.dot_dimension_numbers<[1], [0], [0], [1], [0, 0, 1, 1], [], []>} : vector<8x128xf32>, vector<128x128xf32>, vector<8x128xf32> -> vector<8x128xf32>
    %47 = arith.index_cast %c3_i32 : i32 to index
    %c0_34 = arith.constant 0 : index
    %c0_35 = arith.constant 0 : index
    %48 = vector.load %arg2[%47, %c0_34, %c0_35] : memref<8x8x128xf32, #tpu.memory_space<vmem>>, vector<1x8x128xf32>
    %49 = vector.shape_cast %48 : vector<1x8x128xf32> to vector<8x128xf32>
    %50 = arith.addf %46, %49 : vector<8x128xf32>
    %c0_36 = arith.constant 0 : index
    %c0_37 = arith.constant 0 : index
    %51 = vector.load %arg6[%c0_36, %c0_37] : memref<8x128xf32, #tpu.memory_space<vmem>>, vector<8x128xf32>
    tpu.vector_store %arg6[%c0_36, %c0_37], %50 {strides = array<i32>} : memref<8x128xf32, #tpu.memory_space<vmem>>, vector<8x128xf32>,
    %c4_i32 = arith.constant 4 : i32
    %c0_38 = arith.constant 0 : index
    %c0_39 = arith.constant 0 : index
    %52 = vector.load %arg6[%c0_38, %c0_39] : memref<8x128xf32, #tpu.memory_space<vmem>>, vector<8x128xf32>
    %53 = arith.index_cast %c4_i32 : i32 to index
    %c0_40 = arith.constant 0 : index
    %c0_41 = arith.constant 0 : index
    %54 = vector.load %arg5[%53, %c0_40, %c0_41] : memref<8x8x128xf32, #tpu.memory_space<vmem>>, vector<1x8x128xf32>
    %55 = vector.shape_cast %54 : vector<1x8x128xf32> to vector<8x128xf32>
    %56 = vector.shape_cast %52 : vector<8x128xf32> to vector<1x8x128xf32>
    tpu.vector_store %arg5[%53, %c0_40, %c0_41], %56 {strides = array<i32>} : memref<8x8x128xf32, #tpu.memory_space<vmem>>, vector<1x8x128xf32>,
    %57 = math.tanh %52 : vector<8x128xf32>
    %cst_42 = arith.constant dense<0.000000e+00> : vector<8x128xf32>
    %58 = tpu.matmul %57, %3, %cst_42 {dimension_numbers = #tpu.dot_dimension_numbers<[1], [0], [0], [1], [0, 0, 1, 1], [], []>} : vector<8x128xf32>, vector<128x128xf32>, vector<8x128xf32> -> vector<8x128xf32>
    %59 = arith.index_cast %c4_i32 : i32 to index
    %c0_43 = arith.constant 0 : index
    %c0_44 = arith.constant 0 : index
    %60 = vector.load %arg2[%59, %c0_43, %c0_44] : memref<8x8x128xf32, #tpu.memory_space<vmem>>, vector<1x8x128xf32>
    %61 = vector.shape_cast %60 : vector<1x8x128xf32> to vector<8x128xf32>
    %62 = arith.addf %58, %61 : vector<8x128xf32>
    %c0_45 = arith.constant 0 : index
    %c0_46 = arith.constant 0 : index
    %63 = vector.load %arg6[%c0_45, %c0_46] : memref<8x128xf32, #tpu.memory_space<vmem>>, vector<8x128xf32>
    tpu.vector_store %arg6[%c0_45, %c0_46], %62 {strides = array<i32>} : memref<8x128xf32, #tpu.memory_space<vmem>>, vector<8x128xf32>,
    %c5_i32 = arith.constant 5 : i32
    %c0_47 = arith.constant 0 : index
    %c0_48 = arith.constant 0 : index
    %64 = vector.load %arg6[%c0_47, %c0_48] : memref<8x128xf32, #tpu.memory_space<vmem>>, vector<8x128xf32>
    %65 = arith.index_cast %c5_i32 : i32 to index
    %c0_49 = arith.constant 0 : index
    %c0_50 = arith.constant 0 : index
    %66 = vector.load %arg5[%65, %c0_49, %c0_50] : memref<8x8x128xf32, #tpu.memory_space<vmem>>, vector<1x8x128xf32>
    %67 = vector.shape_cast %66 : vector<1x8x128xf32> to vector<8x128xf32>
    %68 = vector.shape_cast %64 : vector<8x128xf32> to vector<1x8x128xf32>
    tpu.vector_store %arg5[%65, %c0_49, %c0_50], %68 {strides = array<i32>} : memref<8x8x128xf32, #tpu.memory_space<vmem>>, vector<1x8x128xf32>,
    %69 = math.tanh %64 : vector<8x128xf32>
    %cst_51 = arith.constant dense<0.000000e+00> : vector<8x128xf32>
    %70 = tpu.matmul %69, %3, %cst_51 {dimension_numbers = #tpu.dot_dimension_numbers<[1], [0], [0], [1], [0, 0, 1, 1], [], []>} : vector<8x128xf32>, vector<128x128xf32>, vector<8x128xf32> -> vector<8x128xf32>
    %71 = arith.index_cast %c5_i32 : i32 to index
    %c0_52 = arith.constant 0 : index
    %c0_53 = arith.constant 0 : index
    %72 = vector.load %arg2[%71, %c0_52, %c0_53] : memref<8x8x128xf32, #tpu.memory_space<vmem>>, vector<1x8x128xf32>
    %73 = vector.shape_cast %72 : vector<1x8x128xf32> to vector<8x128xf32>
    %74 = arith.addf %70, %73 : vector<8x128xf32>
    %c0_54 = arith.constant 0 : index
    %c0_55 = arith.constant 0 : index
    %75 = vector.load %arg6[%c0_54, %c0_55] : memref<8x128xf32, #tpu.memory_space<vmem>>, vector<8x128xf32>
    tpu.vector_store %arg6[%c0_54, %c0_55], %74 {strides = array<i32>} : memref<8x128xf32, #tpu.memory_space<vmem>>, vector<8x128xf32>,
    %c6_i32 = arith.constant 6 : i32
    %c0_56 = arith.constant 0 : index
    %c0_57 = arith.constant 0 : index
    %76 = vector.load %arg6[%c0_56, %c0_57] : memref<8x128xf32, #tpu.memory_space<vmem>>, vector<8x128xf32>
    %77 = arith.index_cast %c6_i32 : i32 to index
    %c0_58 = arith.constant 0 : index
    %c0_59 = arith.constant 0 : index
    %78 = vector.load %arg5[%77, %c0_58, %c0_59] : memref<8x8x128xf32, #tpu.memory_space<vmem>>, vector<1x8x128xf32>
    %79 = vector.shape_cast %78 : vector<1x8x128xf32> to vector<8x128xf32>
    %80 = vector.shape_cast %76 : vector<8x128xf32> to vector<1x8x128xf32>
    tpu.vector_store %arg5[%77, %c0_58, %c0_59], %80 {strides = array<i32>} : memref<8x8x128xf32, #tpu.memory_space<vmem>>, vector<1x8x128xf32>,
    %81 = math.tanh %76 : vector<8x128xf32>
    %cst_60 = arith.constant dense<0.000000e+00> : vector<8x128xf32>
    %82 = tpu.matmul %81, %3, %cst_60 {dimension_numbers = #tpu.dot_dimension_numbers<[1], [0], [0], [1], [0, 0, 1, 1], [], []>} : vector<8x128xf32>, vector<128x128xf32>, vector<8x128xf32> -> vector<8x128xf32>
    %83 = arith.index_cast %c6_i32 : i32 to index
    %c0_61 = arith.constant 0 : index
    %c0_62 = arith.constant 0 : index
    %84 = vector.load %arg2[%83, %c0_61, %c0_62] : memref<8x8x128xf32, #tpu.memory_space<vmem>>, vector<1x8x128xf32>
    %85 = vector.shape_cast %84 : vector<1x8x128xf32> to vector<8x128xf32>
    %86 = arith.addf %82, %85 : vector<8x128xf32>
    %c0_63 = arith.constant 0 : index
    %c0_64 = arith.constant 0 : index
    %87 = vector.load %arg6[%c0_63, %c0_64] : memref<8x128xf32, #tpu.memory_space<vmem>>, vector<8x128xf32>
    tpu.vector_store %arg6[%c0_63, %c0_64], %86 {strides = array<i32>} : memref<8x128xf32, #tpu.memory_space<vmem>>, vector<8x128xf32>,
    %c7_i32 = arith.constant 7 : i32
    %c0_65 = arith.constant 0 : index
    %c0_66 = arith.constant 0 : index
    %88 = vector.load %arg6[%c0_65, %c0_66] : memref<8x128xf32, #tpu.memory_space<vmem>>, vector<8x128xf32>
    %89 = arith.index_cast %c7_i32 : i32 to index
    %c0_67 = arith.constant 0 : index
    %c0_68 = arith.constant 0 : index
    %90 = vector.load %arg5[%89, %c0_67, %c0_68] : memref<8x8x128xf32, #tpu.memory_space<vmem>>, vector<1x8x128xf32>
    %91 = vector.shape_cast %90 : vector<1x8x128xf32> to vector<8x128xf32>
    %92 = vector.shape_cast %88 : vector<8x128xf32> to vector<1x8x128xf32>
    tpu.vector_store %arg5[%89, %c0_67, %c0_68], %92 {strides = array<i32>} : memref<8x8x128xf32, #tpu.memory_space<vmem>>, vector<1x8x128xf32>,
    %93 = math.tanh %88 : vector<8x128xf32>
    %cst_69 = arith.constant dense<0.000000e+00> : vector<8x128xf32>
    %94 = tpu.matmul %93, %3, %cst_69 {dimension_numbers = #tpu.dot_dimension_numbers<[1], [0], [0], [1], [0, 0, 1, 1], [], []>} : vector<8x128xf32>, vector<128x128xf32>, vector<8x128xf32> -> vector<8x128xf32>
    %95 = arith.index_cast %c7_i32 : i32 to index
    %c0_70 = arith.constant 0 : index
    %c0_71 = arith.constant 0 : index
    %96 = vector.load %arg2[%95, %c0_70, %c0_71] : memref<8x8x128xf32, #tpu.memory_space<vmem>>, vector<1x8x128xf32>
    %97 = vector.shape_cast %96 : vector<1x8x128xf32> to vector<8x128xf32>
    %98 = arith.addf %94, %97 : vector<8x128xf32>
    %c0_72 = arith.constant 0 : index
    %c0_73 = arith.constant 0 : index
    %99 = vector.load %arg6[%c0_72, %c0_73] : memref<8x128xf32, #tpu.memory_space<vmem>>, vector<8x128xf32>
    tpu.vector_store %arg6[%c0_72, %c0_73], %98 {strides = array<i32>} : memref<8x128xf32, #tpu.memory_space<vmem>>, vector<8x128xf32>,
    %c8_i32 = arith.constant 8 : i32
    return
  }
  func.func @transform_0(%arg0: i32, %arg1: i32) -> (i32, i32, i32) {
    %c0_i32 = arith.constant 0 : i32
    %c0_i32_0 = arith.constant 0 : i32
    return %arg1, %arg0, %c0_i32 : i32, i32, i32
  }
  func.func @transform_1(%arg0: i32, %arg1: i32) -> (i32, i32) {
    %c0_i32 = arith.constant 0 : i32
    %c0_i32_0 = arith.constant 0 : i32
    return %arg0, %c0_i32 : i32, i32
  }
  func.func @transform_2(%arg0: i32, %arg1: i32) -> (i32, i32) {
    %c0_i32 = arith.constant 0 : i32
    %c0_i32_0 = arith.constant 0 : i32
    %c0_i32_1 = arith.constant 0 : i32
    return %c0_i32, %c0_i32_0 : i32, i32
  }
  func.func @transform_3(%arg0: i32, %arg1: i32) -> (i32, i32, i32) {
    %c0_i32 = arith.constant 0 : i32
    %c0_i32_0 = arith.constant 0 : i32
    return %arg1, %arg0, %c0_i32 : i32, i32, i32
  }
}

</mosaic_0001>

<llo_original>
// kernel: tpu_custom_call.1
$region0: #{tpu_custom_call.1}
  #allocation0 [shape = 'u32[]', space=smem, size = 0x4, offset = 0x4, fixed_abs, tag = 'smem constant byte address 0x4 - core index']
  #allocation1 [shape = 'u32[72,128]{1,0:T(1,128)}', space=vmem, size = 0x9000, scoped, tag = 'internal scratch']
  #allocation2 [shape = 'f32[8,128]{1,0:T(8,128)}', space=vmem, size = 0x1000, scoped, tag = 'scratch operand']
  %s0 = inlined_call_operand.hbm [shape: f32[8,8,128], index: 0, kind: input, shape index: {}]
  %s1 = inlined_call_operand.hbm [shape: f32[8,128], index: 1, kind: input, shape index: {}]
  %s2 = inlined_call_operand.hbm [shape: f32[128,128], index: 2, kind: input, shape index: {}]
  %s3 = inlined_call_operand.hbm [shape: f32[8,8,128], index: 3, kind: output, shape index: {}]
  %s4 = sld [smem:[#allocation0]]
  $region38: #{tpu_custom_call.1} parent=0
    _
  %s6 = ssub.s32 1, %s4
  %s7 = scalar_select 0, %s6, %s4
  $region1: #{tpu_custom_call.1} parent=0
    #allocation3 [shape = 'u8[32768]{0}', space=vmem, size = 0x8000, scoped, tag = 'input window, operand 0, single buffered']
    #allocation4 [shape = 's32[1]{0}', space=sflag, size = 0x4, scoped, tag = 'scoped memory for tpu_custom_call.1']
    #allocation5 [shape = 's32[1]{0}', space=sflag, size = 0x4, scoped, tag = 'scoped memory for tpu_custom_call.1']
    #allocation6 [shape = 'u8[4096]{0}', space=vmem, size = 0x1000, scoped, tag = 'input window, operand 1, single buffered']
    #allocation7 [shape = 's32[1]{0}', space=sflag, size = 0x4, scoped, tag = 'scoped memory for tpu_custom_call.1']
    #allocation8 [shape = 'u8[65536]{0}', space=vmem, size = 0x10000, scoped, tag = 'input window, operand 2, single buffered']
    #allocation9 [shape = 'u8[32768]{0}', space=vmem, size = 0x8000, scoped, tag = 'output window, operand 0, single buffered']
    %8 = vsyncpa [#allocation4], 0
    %9 = vsyncpa [#allocation7], 0
    %10 = vsyncpa [#allocation5], 0
    // Predicated region
    $region2: #{tpu_custom_call.1} parent=1 // pred_check
      _
    $region3: #{tpu_custom_call.1} parent=1 // pred_check_branch
      %12 = sbr.rel (0) target = $region5
    $region4: #{tpu_custom_call.1} parent=1 // pred_region
      %14 = vsyncadd [#allocation4], 0
      %s15 = sshll.u32 %s0, 4
      %s16 = int_to_ptr.hbm [resolvable:$true] %s15
      %s17 = sshll.u32 [#allocation3], 4
      %s18 = int_to_ptr.vmem [resolvable:$true] %s17
      %23 = dma.hbm_to_vmem [thread:$0]  %s16, 1024, %s18, [#allocation4], 128, 128, 8
    $region5: #{tpu_custom_call.1} parent=1 // pred_fallthru
      _
    // Predicated region
    $region6: #{tpu_custom_call.1} parent=1 // pred_check
      _
    $region7: #{tpu_custom_call.1} parent=1 // pred_check_branch
      %25 = sbr.rel (0) target = $region9
    $region8: #{tpu_custom_call.1} parent=1 // pred_region
      %27 = vsyncadd [#allocation7], 0
      %s29 = sshll.u32 %s1, 4
      %s30 = int_to_ptr.hbm [resolvable:$true] %s29
      %s31 = sshll.u32 [#allocation6], 4
      %s32 = int_to_ptr.vmem [resolvable:$true] %s31
      %34 = dma.hbm_to_vmem [thread:$0]  %s30, 128, %s32, [#allocation7]
    $region9: #{tpu_custom_call.1} parent=1 // pred_fallthru
      _
    // Predicated region
    $region10: #{tpu_custom_call.1} parent=1 // pred_check
      _
    $region11: #{tpu_custom_call.1} parent=1 // pred_check_branch
      %36 = sbr.rel (0) target = $region13
    $region12: #{tpu_custom_call.1} parent=1 // pred_region
      %38 = vsyncadd [#allocation7], 0
      %s39 = sshll.u32 %s2, 4
      %s40 = int_to_ptr.hbm [resolvable:$true] %s39
      %s41 = sshll.u32 [#allocation8], 4
      %s42 = int_to_ptr.vmem [resolvable:$true] %s41
      %47 = dma.hbm_to_vmem [thread:$0]  %s40, 2048, %s42, [#allocation7], 128, 128, 8
    $region13: #{tpu_custom_call.1} parent=1 // pred_fallthru
      _
    // Predicated region
    $region14: #{tpu_custom_call.1} parent=1 // pred_check
      _
    $region15: #{tpu_custom_call.1} parent=1 // pred_check_branch
      %49 = sbr.rel (0) target = $region17
    $region16: #{tpu_custom_call.1} parent=1 // pred_region
      %51 = dma.done [#allocation4], 1024
    $region17: #{tpu_custom_call.1} parent=1 // pred_fallthru
      _
    // Predicated region
    $region18: #{tpu_custom_call.1} parent=1 // pred_check
      _
    $region19: #{tpu_custom_call.1} parent=1 // pred_check_branch
      %53 = sbr.rel (0) target = $region21
    $region20: #{tpu_custom_call.1} parent=1 // pred_region
      %55 = dma.done [#allocation7], 128
    $region21: #{tpu_custom_call.1} parent=1 // pred_fallthru
      _
    // Predicated region
    $region22: #{tpu_custom_call.1} parent=1 // pred_check
      _
    $region23: #{tpu_custom_call.1} parent=1 // pred_check_branch
      %57 = sbr.rel (0) target = $region25
    $region24: #{tpu_custom_call.1} parent=1 // pred_region
      %59 = dma.done [#allocation7], 2048
    $region25: #{tpu_custom_call.1} parent=1 // pred_fallthru
      _
    %p60 = scmp.eq.s32.totalorder 0, 0
    // Predicated region
    $region26: #{tpu_custom_call.1} parent=1 // pred_check
      %p61 = pneg %p60
    $region27: #{tpu_custom_call.1} parent=1 // pred_check_branch
      %63 = sbr.rel (%p61) target = $region29
    $region28: #{tpu_custom_call.1} parent=1 // pred_region
      %v64 = vld [vmem:[#allocation6] sm:$0xff]
      %65 = vst [vmem:[#allocation2] sm:$0xff] %v64
    $region29: #{tpu_custom_call.1} parent=1 // pred_fallthru
      _
    %v66 = vld [vmem:[#allocation8] sm:$0xff]
    %v67 = vld [vmem:[#allocation8 + $0x8] sm:$0xff]
    %v68 = vld [vmem:[#allocation8 + $0x10] sm:$0xff]
    %v69 = vld [vmem:[#allocation8 + $0x18] sm:$0xff]
    %v70 = vld [vmem:[#allocation8 + $0x20] sm:$0xff]
    %v71 = vld [vmem:[#allocation8 + $0x28] sm:$0xff]
    %v72 = vld [vmem:[#allocation8 + $0x30] sm:$0xff]
    %v73 = vld [vmem:[#allocation8 + $0x38] sm:$0xff]
    %v74 = vld [vmem:[#allocation8 + $0x40] sm:$0xff]
    %v75 = vld [vmem:[#allocation8 + $0x48] sm:$0xff]
    %v76 = vld [vmem:[#allocation8 + $0x50] sm:$0xff]
    %v77 = vld [vmem:[#allocation8 + $0x58] sm:$0xff]
    %v78 = vld [vmem:[#allocation8 + $0x60] sm:$0xff]
    %v79 = vld [vmem:[#allocation8 + $0x68] sm:$0xff]
    %v80 = vld [vmem:[#allocation8 + $0x70] sm:$0xff]
    %v81 = vld [vmem:[#allocation8 + $0x78] sm:$0xff]
    %v82 = vld [vmem:[#allocation2] sm:$0xff]
    %83 = vst [vmem:[#allocation9] sm:$0xff] %v82
    %v84 = vtanh.pop %v82
    %v85 = vld [vmem:[#allocation3] sm:$0xff]
    %86 = vmatpush.msra.mxu0 %v81
    %87 = vmatpush.msra.mxu0 %v80
    %88 = vmatpush.msra.mxu0 %v79
    %89 = vmatpush.msra.mxu0 %v78
    %90 = vmatpush.msra.mxu0 %v77
    %91 = vmatpush.msra.mxu0 %v76
    %92 = vmatpush.msra.mxu0 %v75
    %93 = vmatpush.msra.mxu0 %v74
    %94 = vmatpush.msra.mxu0 %v73
    %95 = vmatpush.msra.mxu0 %v72
    %96 = vmatpush.msra.mxu0 %v71
    %97 = vmatpush.msra.mxu0 %v70
    %98 = vmatpush.msra.mxu0 %v69
    %99 = vmatpush.msra.mxu0 %v68
    %100 = vmatpush.msra.mxu0 %v67
    %101 = vmatpush.msra.mxu0 %v66
    %102 = vmatmul.f32.gmra.mxu0 %v84
    %v103 = vpop.f32.mrf.mxu0
    %v104 = vadd.f32 %v85, %v103
    %105 = vdwg.mxu0
    %106 = vst [vmem:[#allocation2] sm:$0xff] %v104
    %v107 = vld [vmem:[#allocation2] sm:$0xff]
    %s108 = scalar_lea.vmem [#allocation9], 8
    %109 = vst [vmem:[%s108] sm:$0xff] %v107
    %v110 = vtanh.pop %v107
    %s111 = scalar_lea.vmem [#allocation3], 8
    %v112 = vld [vmem:[%s111] sm:$0xff]
    %113 = vmatpush.msra.mxu0 %v81
    %114 = vmatpush.msra.mxu0 %v80
    %115 = vmatpush.msra.mxu0 %v79
    %116 = vmatpush.msra.mxu0 %v78
    %117 = vmatpush.msra.mxu0 %v77
    %118 = vmatpush.msra.mxu0 %v76
    %119 = vmatpush.msra.mxu0 %v75
    %120 = vmatpush.msra.mxu0 %v74
    %121 = vmatpush.msra.mxu0 %v73
    %122 = vmatpush.msra.mxu0 %v72
    %123 = vmatpush.msra.mxu0 %v71
    %124 = vmatpush.msra.mxu0 %v70
    %125 = vmatpush.msra.mxu0 %v69
    %126 = vmatpush.msra.mxu0 %v68
    %127 = vmatpush.msra.mxu0 %v67
    %128 = vmatpush.msra.mxu0 %v66
    %129 = vmatmul.f32.gmra.mxu0 %v110
    %v130 = vpop.f32.mrf.mxu0
    %v131 = vadd.f32 %v112, %v130
    %132 = vdwg.mxu0
    %133 = vst [vmem:[#allocation2] sm:$0xff] %v131
    %v134 = vld [vmem:[#allocation2] sm:$0xff]
    %s135 = scalar_lea.vmem [#allocation9], 16
    %136 = vst [vmem:[%s135] sm:$0xff] %v134
    %v137 = vtanh.pop %v134
    %s138 = scalar_lea.vmem [#allocation3], 16
    %v139 = vld [vmem:[%s138] sm:$0xff]
    %140 = vmatpush.msra.mxu0 %v81
    %141 = vmatpush.msra.mxu0 %v80
    %142 = vmatpush.msra.mxu0 %v79
    %143 = vmatpush.msra.mxu0 %v78
    %144 = vmatpush.msra.mxu0 %v77
    %145 = vmatpush.msra.mxu0 %v76
    %146 = vmatpush.msra.mxu0 %v75
    %147 = vmatpush.msra.mxu0 %v74
    %148 = vmatpush.msra.mxu0 %v73
    %149 = vmatpush.msra.mxu0 %v72
    %150 = vmatpush.msra.mxu0 %v71
    %151 = vmatpush.msra.mxu0 %v70
    %152 = vmatpush.msra.mxu0 %v69
    %153 = vmatpush.msra.mxu0 %v68
    %154 = vmatpush.msra.mxu0 %v67
    %155 = vmatpush.msra.mxu0 %v66
    %156 = vmatmul.f32.gmra.mxu0 %v137
    %v157 = vpop.f32.mrf.mxu0
    %v158 = vadd.f32 %v139, %v157
    %159 = vdwg.mxu0
    %160 = vst [vmem:[#allocation2] sm:$0xff] %v158
    %v161 = vld [vmem:[#allocation2] sm:$0xff]
    %s162 = scalar_lea.vmem [#allocation9], 24
    %163 = vst [vmem:[%s162] sm:$0xff] %v161
    %v164 = vtanh.pop %v161
    %s165 = scalar_lea.vmem [#allocation3], 24
    %v166 = vld [vmem:[%s165] sm:$0xff]
    %167 = vmatpush.msra.mxu0 %v81
    %168 = vmatpush.msra.mxu0 %v80
    %169 = vmatpush.msra.mxu0 %v79
    %170 = vmatpush.msra.mxu0 %v78
    %171 = vmatpush.msra.mxu0 %v77
    %172 = vmatpush.msra.mxu0 %v76
    %173 = vmatpush.msra.mxu0 %v75
    %174 = vmatpush.msra.mxu0 %v74
    %175 = vmatpush.msra.mxu0 %v73
    %176 = vmatpush.msra.mxu0 %v72
    %177 = vmatpush.msra.mxu0 %v71
    %178 = vmatpush.msra.mxu0 %v70
    %179 = vmatpush.msra.mxu0 %v69
    %180 = vmatpush.msra.mxu0 %v68
    %181 = vmatpush.msra.mxu0 %v67
    %182 = vmatpush.msra.mxu0 %v66
    %183 = vmatmul.f32.gmra.mxu0 %v164
    %v184 = vpop.f32.mrf.mxu0
    %v185 = vadd.f32 %v166, %v184
    %186 = vdwg.mxu0
    %187 = vst [vmem:[#allocation2] sm:$0xff] %v185
    %v188 = vld [vmem:[#allocation2] sm:$0xff]
    %s189 = scalar_lea.vmem [#allocation9], 32
    %190 = vst [vmem:[%s189] sm:$0xff] %v188
    %v191 = vtanh.pop %v188
    %s192 = scalar_lea.vmem [#allocation3], 32
    %v193 = vld [vmem:[%s192] sm:$0xff]
    %194 = vmatpush.msra.mxu0 %v81
    %195 = vmatpush.msra.mxu0 %v80
    %196 = vmatpush.msra.mxu0 %v79
    %197 = vmatpush.msra.mxu0 %v78
    %198 = vmatpush.msra.mxu0 %v77
    %199 = vmatpush.msra.mxu0 %v76
    %200 = vmatpush.msra.mxu0 %v75
    %201 = vmatpush.msra.mxu0 %v74
    %202 = vmatpush.msra.mxu0 %v73
    %203 = vmatpush.msra.mxu0 %v72
    %204 = vmatpush.msra.mxu0 %v71
    %205 = vmatpush.msra.mxu0 %v70
    %206 = vmatpush.msra.mxu0 %v69
    %207 = vmatpush.msra.mxu0 %v68
    %208 = vmatpush.msra.mxu0 %v67
    %209 = vmatpush.msra.mxu0 %v66
    %210 = vmatmul.f32.gmra.mxu0 %v191
    %v211 = vpop.f32.mrf.mxu0
    %v212 = vadd.f32 %v193, %v211
    %213 = vdwg.mxu0
    %214 = vst [vmem:[#allocation2] sm:$0xff] %v212
    %v215 = vld [vmem:[#allocation2] sm:$0xff]
    %s216 = scalar_lea.vmem [#allocation9], 40
    %217 = vst [vmem:[%s216] sm:$0xff] %v215
    %v218 = vtanh.pop %v215
    %s219 = scalar_lea.vmem [#allocation3], 40
    %v220 = vld [vmem:[%s219] sm:$0xff]
    %221 = vmatpush.msra.mxu0 %v81
    %222 = vmatpush.msra.mxu0 %v80
    %223 = vmatpush.msra.mxu0 %v79
    %224 = vmatpush.msra.mxu0 %v78
    %225 = vmatpush.msra.mxu0 %v77
    %226 = vmatpush.msra.mxu0 %v76
    %227 = vmatpush.msra.mxu0 %v75
    %228 = vmatpush.msra.mxu0 %v74
    %229 = vmatpush.msra.mxu0 %v73
    %230 = vmatpush.msra.mxu0 %v72
    %231 = vmatpush.msra.mxu0 %v71
    %232 = vmatpush.msra.mxu0 %v70
    %233 = vmatpush.msra.mxu0 %v69
    %234 = vmatpush.msra.mxu0 %v68
    %235 = vmatpush.msra.mxu0 %v67
    %236 = vmatpush.msra.mxu0 %v66
    %237 = vmatmul.f32.gmra.mxu0 %v218
    %v238 = vpop.f32.mrf.mxu0
    %v239 = vadd.f32 %v220, %v238
    %240 = vdwg.mxu0
    %241 = vst [vmem:[#allocation2] sm:$0xff] %v239
    %v242 = vld [vmem:[#allocation2] sm:$0xff]
    %s243 = scalar_lea.vmem [#allocation9], 48
    %244 = vst [vmem:[%s243] sm:$0xff] %v242
    %v245 = vtanh.pop %v242
    %s246 = scalar_lea.vmem [#allocation3], 48
    %v247 = vld [vmem:[%s246] sm:$0xff]
    %248 = vmatpush.msra.mxu0 %v81
    %249 = vmatpush.msra.mxu0 %v80
    %250 = vmatpush.msra.mxu0 %v79
    %251 = vmatpush.msra.mxu0 %v78
    %252 = vmatpush.msra.mxu0 %v77
    %253 = vmatpush.msra.mxu0 %v76
    %254 = vmatpush.msra.mxu0 %v75
    %255 = vmatpush.msra.mxu0 %v74
    %256 = vmatpush.msra.mxu0 %v73
    %257 = vmatpush.msra.mxu0 %v72
    %258 = vmatpush.msra.mxu0 %v71
    %259 = vmatpush.msra.mxu0 %v70
    %260 = vmatpush.msra.mxu0 %v69
    %261 = vmatpush.msra.mxu0 %v68
    %262 = vmatpush.msra.mxu0 %v67
    %263 = vmatpush.msra.mxu0 %v66
    %264 = vmatmul.f32.gmra.mxu0 %v245
    %v265 = vpop.f32.mrf.mxu0
    %v266 = vadd.f32 %v247, %v265
    %267 = vdwg.mxu0
    %268 = vst [vmem:[#allocation2] sm:$0xff] %v266
    %v269 = vld [vmem:[#allocation2] sm:$0xff]
    %s270 = scalar_lea.vmem [#allocation9], 56
    %271 = vst [vmem:[%s270] sm:$0xff] %v269
    %v272 = vtanh.pop %v269
    %s273 = scalar_lea.vmem [#allocation3], 56
    %v274 = vld [vmem:[%s273] sm:$0xff]
    %275 = vmatpush.msra.mxu0 %v81
    %276 = vmatpush.msra.mxu0 %v80
    %277 = vmatpush.msra.mxu0 %v79
    %278 = vmatpush.msra.mxu0 %v78
    %279 = vmatpush.msra.mxu0 %v77
    %280 = vmatpush.msra.mxu0 %v76
    %281 = vmatpush.msra.mxu0 %v75
    %282 = vmatpush.msra.mxu0 %v74
    %283 = vmatpush.msra.mxu0 %v73
    %284 = vmatpush.msra.mxu0 %v72
    %285 = vmatpush.msra.mxu0 %v71
    %286 = vmatpush.msra.mxu0 %v70
    %287 = vmatpush.msra.mxu0 %v69
    %288 = vmatpush.msra.mxu0 %v68
    %289 = vmatpush.msra.mxu0 %v67
    %290 = vmatpush.msra.mxu0 %v66
    %291 = vmatmul.f32.gmra.mxu0 %v272
    %v292 = vpop.f32.mrf.mxu0
    %v293 = vadd.f32 %v274, %v292
    %294 = vdwg.mxu0
    %295 = vst [vmem:[#allocation2] sm:$0xff] %v293
    // Predicated region
    $region30: #{tpu_custom_call.1} parent=1 // pred_check
      _
    $region31: #{tpu_custom_call.1} parent=1 // pred_check_branch
      %297 = sbr.rel (0) target = $region33
    $region32: #{tpu_custom_call.1} parent=1 // pred_region
      %299 = vsyncadd [#allocation5], 0
      %s300 = sshll.u32 [#allocation9], 4
      %s301 = int_to_ptr.vmem [resolvable:$true] %s300
      %s302 = sshll.u32 %s3, 4
      %s303 = int_to_ptr.hbm [resolvable:$true] %s302
      %308 = dma.vmem_to_hbm [thread:$0]  %s301, 1024, %s303, [#allocation5], 128, 128, 8
    $region33: #{tpu_custom_call.1} parent=1 // pred_fallthru
      _
    // Predicated region
    $region34: #{tpu_custom_call.1} parent=1 // pred_check
      _
    $region35: #{tpu_custom_call.1} parent=1 // pred_check_branch
      %310 = sbr.rel (0) target = $region37
    $region36: #{tpu_custom_call.1} parent=1 // pred_region
      %312 = dma.done [#allocation5], 1024
    $region37: #{tpu_custom_call.1} parent=1 // pred_fallthru
      _
    %313 = vsyncpa [#allocation4], 1
    %314 = vsyncpa [#allocation7], 1
    %315 = vsyncpa [#allocation5], 1

</llo_original>
